<compile_context>
chip_gen: v7x
topology: tpu7x:2x2x1
jax: 0.10.0
libtpu: 0.0.40
codegen_flags: <defaults>
</compile_context>

<pallas_src>
import jax
import jax.numpy as jnp
from jax.experimental import pallas as pl
from jax.experimental.pallas import tpu as pltpu


def _dma_copy_kernel(x_hbm, o_hbm, sem):
    # Single raw HBM->HBM DMA: no VMEM round-trip, no grid, no per-step cost.
    cp = pltpu.make_async_copy(x_hbm, o_hbm, sem)
    cp.start()
    cp.wait()


def _pallas_hbm_copy(x):
    """Identity copy of `x` into a fresh buffer via one raw DMA."""
    return pl.pallas_call(
        _dma_copy_kernel,
        out_shape=jax.ShapeDtypeStruct(x.shape, x.dtype),
        in_specs=[pl.BlockSpec(memory_space=pl.ANY)],
        out_specs=pl.BlockSpec(memory_space=pl.ANY),
        scratch_shapes=[pltpu.SemaphoreType.DMA(())],
        compiler_params=pltpu.CompilerParams(has_side_effects=True),
    )(x)


def squeeze_forward(x, *, materialize=False):
    """JAX equivalent of Squeeze.forward.

    Semantics (matching torch):
      - if x.shape[0] != 0: return x with ALL singleton dims removed
      - else:               squeeze, then view(1, *squeezed_shape)

    Default path is a metadata-only reshape (free).  Set `materialize=True`
    to force the result into a fresh HBM buffer via the Pallas DMA kernel.
    """
    in_shape = x.shape
    squeezed_shape = tuple(d for d in in_shape if d != 1)

    if len(in_shape) > 0 and in_shape[0] == 0:
        # Zero-sized leading dim: squeeze then prepend a leading 1.
        # Empty tensor -> nothing to copy, metadata only.
        return jnp.reshape(x, (1,) + squeezed_shape)

    y = jnp.reshape(x, squeezed_shape)  # pure metadata; strictly fastest path

    if not materialize or y.size == 0 or y.ndim == 0:
        # Scalars / empty tensors: a DMA buys nothing; stay metadata-only.
        return y

    # Explicitly requested fresh buffer: one raw HBM->HBM DMA.
    return _pallas_hbm_copy(y)


if __name__ == "__main__":
    key = jax.random.PRNGKey(0)

    # Small NCHW-style input with a singleton channel dim: (2, 1, 16, 16).
    x = jax.random.normal(key, (2, 1, 16, 16), dtype=jnp.float32)
    ref = jnp.squeeze(x)

    # Default (metadata-only) path.
    out_meta = jax.block_until_ready(squeeze_forward(x))
    assert out_meta.shape == ref.shape == (2, 16, 16), out_meta.shape
    assert out_meta.dtype == x.dtype
    assert bool(jnp.allclose(out_meta, ref)), "mismatch (metadata path)"

    # Pallas kernel path: single raw HBM->HBM DMA into a fresh buffer.
    out_kernel = jax.block_until_ready(squeeze_forward(x, materialize=True))
    assert out_kernel.shape == ref.shape == (2, 16, 16), out_kernel.shape
    assert out_kernel.dtype == x.dtype
    assert bool(jnp.allclose(out_kernel, ref)), "mismatch (DMA kernel path)"

    # Fully-singleton case -> scalar, metadata only.
    z = jax.random.normal(jax.random.PRNGKey(2), (1, 1, 1, 1), dtype=jnp.float32)
    out_z = jax.block_until_ready(squeeze_forward(z))
    assert out_z.shape == ()
    assert bool(jnp.allclose(out_z, jnp.squeeze(z)))

    # Zero-sized leading dim branch: squeeze then view(1, *squeezed).
    w = jnp.zeros((0, 1, 3), dtype=jnp.float32)
    out_w = squeeze_forward(w)
    assert out_w.shape == (1, 0, 3), out_w.shape

    print("KERNEL_OK")
</pallas_src>

<mosaic_0001>
module attributes {stable_mosaic.version = 11 : i64} {
  func.func @_dma_copy_kernel(%arg0: memref<2x16x16xf32, #tpu.memory_space<any>>, %arg1: memref<2x16x16xf32, #tpu.memory_space<any>>, %arg2: memref<!tpu.dma_semaphore, #tpu.memory_space<semaphore_mem>>) attributes {dimension_semantics = [], scalar_prefetch = 0 : i64, scratch_operands = 1 : i64, tpu.core_type = #tpu.core_type<tc>} {
    tpu.enqueue_dma source(%arg0 : memref<2x16x16xf32, #tpu.memory_space<any>>) target(%arg1 : memref<2x16x16xf32, #tpu.memory_space<any>>) target_semaphore(%arg2 : memref<!tpu.dma_semaphore, #tpu.memory_space<semaphore_mem>>)
    tpu.wait_dma2 semaphore(%arg2 : memref<!tpu.dma_semaphore, #tpu.memory_space<semaphore_mem>>) src(%arg0 : memref<2x16x16xf32, #tpu.memory_space<any>>) dst(%arg1 : memref<2x16x16xf32, #tpu.memory_space<any>>)
    return
  }
}

</mosaic_0001>

<llo_original>
// kernel: tpu_custom_call.1
$region0: #{tpu_custom_call.1}
  #allocation0 [shape = 'u32[]', space=smem, size = 0x4, offset = 0x4, fixed_abs, tag = 'smem constant byte address 0x4 - core index']
  #allocation1 [shape = 'u32[144,128]{1,0:T(1,128)}', space=vmem, size = 0x12000, scoped, tag = 'internal scratch']
  #allocation2 [shape = 's32[1]{0}', space=sflag, size = 0x4, scoped, tag = 'scratch operand']
  #allocation3 [shape = 's32[]', space=sflag, size = 0x4, offset = 0, fixed_abs, tag = 'sflag constant byte address 0x0 - dummy sync flag']
  #allocation4 [shape = 'u32[0]{0}', space=smem, size = 0, offset = 0, fixed_abs, tag = 'smem constant byte address 0x0 - null']
  %s0 = inlined_call_operand.hbm [shape: f32[2,16,16], index: 0, kind: input, shape index: {}]
  %s1 = inlined_call_operand.hbm [shape: f32[2,16,16], index: 1, kind: output, shape index: {}]
  %s2 = sld [smem:[#allocation0]]
  $region2: #{tpu_custom_call.1} parent=0
    _
  %s4 = ssub.s32 1, %s2
  %s5 = scalar_select 0, %s4, %s2
  %s7 = sshll.u32 1, 14
  %s8 = sxor.u32 4294967295, %s7
  %s11 = sshll.u32 3, 24
  %s12 = sxor.u32 4294967295, %s11
  %s13 = sand.u32 0, %s12
  %s15 = sor.u32 %s13, 0
  %18 = dma.general %s0, 512, %s1, [#allocation2], [#allocation3], [#allocation4], %s15, 0
  %s19 = smul.u32 2, 16
  %s20 = smul.u32 %s19, 1
  %s21 = sshll.u32 %s20, 4
  %22 = dma.done [#allocation2], %s21
  %23 = vsyncmov [#allocation2]
  %s24 = vpop.sfrf %23
  %p25 = scmp.eq.s32.totalorder %s24, 0
  %p26 = pneg %p25
  %28 = shalt.err (%p26)

</llo_original>
